<compile_context>
chip_gen: v7x
topology: tpu7x:2x2x1
jax: 0.10.0
libtpu: 0.0.40
codegen_flags: <defaults>
</compile_context>

<pallas_src>
import functools

import numpy as np

import jax
import jax.numpy as jnp
from jax import lax
from jax.experimental import pallas as pl
from jax.experimental.pallas import tpu as pltpu


_MATMUL_MAX_L = 1024  # above this, the (L, L) f32 weight (>4 MiB) is not worth it


# ----------------------------------------------------------------------------
# Kernels
# ----------------------------------------------------------------------------
def _decomp_mm_kernel(w_ref, x_ref, res_ref, mean_ref):
    """Moving average via one MXU matmul per batch row of the block.

    w_ref: (L, L) f32 banded averaging matrix (rows sum to 1, edge replication
           baked in).  Constant index_map -> DMA'd once, VMEM resident.
    x_ref/res_ref/mean_ref: (TB, L, TC).
    """
    w = w_ref[...]                                     # (L, L) f32

    def body(b, carry):
        xf = x_ref[b].astype(jnp.float32)              # (L, TC)
        mean_f = jnp.dot(w, xf, preferred_element_type=jnp.float32)
        mean_ref[b] = mean_f.astype(mean_ref.dtype)
        res_ref[b] = (xf - mean_f).astype(res_ref.dtype)
        return carry

    tb = x_ref.shape[0]
    if tb == 1:
        body(0, 0)
    else:
        lax.fori_loop(0, tb, body, 0)


def _decomp_tap_kernel(x_ref, res_ref, mean_ref, *, kernel_size: int):
    """Fallback for long L: direct k-tap f32 sum (one live accumulator)."""
    pad = (kernel_size - 1) // 2
    tb, L, TC = x_ref.shape

    def body(b, carry):
        xf = x_ref[b].astype(jnp.float32)              # (L, TC)
        if pad == 0:
            mean_f = xf
        else:
            front = jnp.broadcast_to(xf[0:1, :], (pad, TC))
            end = jnp.broadcast_to(xf[L - 1:L, :], (pad, TC))
            xp = jnp.concatenate([front, xf, end], axis=0)   # (L + 2*pad, TC)
            acc = xp[0:L, :]
            for j in range(1, kernel_size):
                acc = acc + xp[j:j + L, :]
            mean_f = acc * (1.0 / kernel_size)
        mean_ref[b] = mean_f.astype(mean_ref.dtype)
        res_ref[b] = (xf - mean_f).astype(res_ref.dtype)
        return carry

    if tb == 1:
        body(0, 0)
    else:
        lax.fori_loop(0, tb, body, 0)


# ----------------------------------------------------------------------------
# Tiling / wrapper helpers
# ----------------------------------------------------------------------------
def _vmem_capacity_bytes() -> int:
    try:
        return int(pltpu.get_tpu_info().vmem_capacity_bytes)
    except Exception:
        return 128 * 1024 * 1024  # v5e/v6e default if query unavailable


def _choose_channel_tile(C: int, L: int, itemsize: int, budget: int) -> int:
    """Largest multiple of 128 dividing C whose (L, TC) slab fits the budget."""
    if C % 128 != 0:
        # Ragged channel count: take the full axis.  Block dim == array dim
        # keeps the layout legal and the HBM DMA fully contiguous (the whole
        # minor axis lives in one block); lane masking only costs VPU/VMEM
        # occupancy, not strided DMA.
        return C
    tc = C
    while tc >= 128:
        if C % tc == 0 and tc % 128 == 0 and L * tc * itemsize <= budget:
            return tc
        tc -= 128
    return 128


def _choose_batch_tile(B: int, n_ctiles: int, L: int, TC: int,
                       itemsize: int, budget: int) -> int:
    """Largest divisor of B fitting the budget while keeping >= 2 grid steps."""
    max_steps = B * n_ctiles
    min_steps = 2 if max_steps >= 2 else 1
    for tb in range(B, 0, -1):
        if B % tb != 0:
            continue
        if tb * L * TC * itemsize > budget:
            continue
        if (B // tb) * n_ctiles < min_steps:
            continue
        return tb
    return 1


def _build_weight(L: int, kernel_size: int) -> jax.Array:
    """(L, L) f32 averaging matrix with edge-replicate padding baked in."""
    pad = (kernel_size - 1) // 2
    t = np.arange(L)[:, None]                       # (L, 1)
    j = np.arange(kernel_size)[None, :]             # (1, k)
    u = np.clip(t + j - pad, 0, L - 1)              # (L, k) source index per tap
    w = np.zeros((L, L), np.float32)
    np.add.at(w, (np.broadcast_to(t, u.shape), u), 1.0)
    w /= float(kernel_size)
    return jnp.asarray(w)


# ----------------------------------------------------------------------------
# Public entry point
# ----------------------------------------------------------------------------
def series_decomposition(x: jax.Array, kernel_size: int, *, use_matmul=None):
    """x: [B, L, C]. Returns (res, moving_mean), each [B, L, C]."""
    assert kernel_size % 2 == 1, "kernel_size must be odd to preserve seq length"
    B, L, C = x.shape
    itemsize = jnp.dtype(x.dtype).itemsize

    vmem_cap = _vmem_capacity_bytes()
    # ~2 MiB per array per block on 128 MiB-VMEM parts (v5e/v6e), ~1 MiB on
    # 64 MiB parts (v7x).
    budget = 2 * 1024 * 1024 if vmem_cap >= 96 * 1024 * 1024 else 1 * 1024 * 1024

    TC = _choose_channel_tile(C, L, itemsize, budget)
    TB = _choose_batch_tile(B, C // TC, L, TC, itemsize, budget)
    grid = (B // TB, C // TC)

    if use_matmul is None:
        use_matmul = L <= _MATMUL_MAX_L

    x_block = pl.BlockSpec((TB, L, TC), lambda i, j: (i, 0, j))
    out_shape = (
        jax.ShapeDtypeStruct((B, L, C), x.dtype),   # res
        jax.ShapeDtypeStruct((B, L, C), x.dtype),   # moving_mean
    )

    if use_matmul:
        w = _build_weight(L, kernel_size)
        kernel = _decomp_mm_kernel
        in_specs = [pl.BlockSpec((L, L), lambda i, j: (0, 0)), x_block]
        args = (w, x)
        w_bytes = L * L * 4
        flops = 2 * B * L * L * C
    else:
        kernel = functools.partial(_decomp_tap_kernel, kernel_size=kernel_size)
        in_specs = [x_block]
        args = (x,)
        w_bytes = 0
        flops = B * L * C * (kernel_size + 2)

    cost = pl.CostEstimate(
        flops=flops,
        transcendentals=0,
        bytes_accessed=3 * B * L * C * itemsize + w_bytes,
    )

    # Honest per-block VMEM need: 3 pipelined arrays x 2 buffers, the resident
    # weight (x2 buffers), and per-row f32 temporaries (one batch row live).
    block_bytes = TB * L * TC * itemsize
    temps_bytes = 4 * L * TC * 4
    need = 6 * block_bytes + 2 * w_bytes + temps_bytes + (1 << 20)
    vmem_limit = None
    if need > 16 * 1024 * 1024:
        cap = min(vmem_cap // 2, 64 * 1024 * 1024)   # <= 32 MiB on v7x
        vmem_limit = min(need, cap)

    return pl.pallas_call(
        kernel,
        out_shape=out_shape,
        grid_spec=pltpu.PrefetchScalarGridSpec(
            num_scalar_prefetch=0,
            grid=grid,
            in_specs=in_specs,
            out_specs=(x_block, x_block),
        ),
        compiler_params=pltpu.CompilerParams(
            dimension_semantics=("parallel", "parallel"),
            vmem_limit_bytes=vmem_limit,
        ),
        cost_estimate=cost,
    )(*args)


# ----------------------------------------------------------------------------
# Pure-JAX reference + self-test
# ----------------------------------------------------------------------------
def _reference(x, kernel_size):
    """Pure-JAX reference mirroring the PyTorch forward."""
    pad = (kernel_size - 1) // 2
    front = jnp.repeat(x[:, 0:1, :], pad, axis=1)
    end = jnp.repeat(x[:, -1:, :], pad, axis=1)
    xp = jnp.concatenate([front, x, end], axis=1)
    L = x.shape[1]
    windows = jnp.stack([xp[:, j:j + L, :] for j in range(kernel_size)], axis=0)
    mean = jnp.mean(windows, axis=0)
    return x - mean, mean


if __name__ == "__main__":
    key = jax.random.PRNGKey(0)

    # Case 1: small ragged-channel shape (TC = C path, MXU-matmul kernel).
    B, L, C = 2, 16, 8
    k1 = 5
    x1 = jax.random.normal(key, (B, L, C), dtype=jnp.float32)
    res1, mean1 = jax.block_until_ready(series_decomposition(x1, k1))
    ref_res1, ref_mean1 = _reference(x1, k1)
    assert jnp.allclose(mean1, ref_mean1, atol=1e-5), "moving_mean mismatch (case 1)"
    assert jnp.allclose(res1, ref_res1, atol=1e-5), "residual mismatch (case 1)"

    # Case 2: lane-dense channel tiling (C multiple of 128), Autoformer-default
    # kernel_size=25 (window longer than L -> heavy edge replication).
    B2, L2, C2 = 2, 24, 640
    k2 = 25
    x2 = jax.random.normal(jax.random.fold_in(key, 1), (B2, L2, C2),
                           dtype=jnp.float32)
    res2, mean2 = jax.block_until_ready(series_decomposition(x2, k2))
    ref_res2, ref_mean2 = _reference(x2, k2)
    assert jnp.allclose(mean2, ref_mean2, atol=1e-4), "moving_mean mismatch (case 2)"
    assert jnp.allclose(res2, ref_res2, atol=1e-4), "residual mismatch (case 2)"

    # Case 3: exercise the long-L fallback (direct k-tap sum) at a small shape.
    B3, L3, C3 = 2, 32, 8
    k3 = 7
    x3 = jax.random.normal(jax.random.fold_in(key, 2), (B3, L3, C3),
                           dtype=jnp.float32)
    res3, mean3 = jax.block_until_ready(
        series_decomposition(x3, k3, use_matmul=False))
    ref_res3, ref_mean3 = _reference(x3, k3)
    assert jnp.allclose(mean3, ref_mean3, atol=1e-5), "moving_mean mismatch (case 3)"
    assert jnp.allclose(res3, ref_res3, atol=1e-5), "residual mismatch (case 3)"

    print("KERNEL_OK")
</pallas_src>

<mosaic_0001>
module attributes {stable_mosaic.version = 11 : i64} {
  func.func @_decomp_mm_kernel(%arg0: i32, %arg1: i32, %arg2: memref<16x16xf32, #tpu.memory_space<vmem>>, %arg3: memref<1x16x8xf32, #tpu.memory_space<vmem>>, %arg4: memref<1x16x8xf32, #tpu.memory_space<vmem>>, %arg5: memref<1x16x8xf32, #tpu.memory_space<vmem>>) attributes {dimension_semantics = [#tpu.dimension_semantics<parallel>, #tpu.dimension_semantics<parallel>], iteration_bounds = array<i64: 2, 1>, scalar_prefetch = 0 : i64, scratch_operands = 0 : i64, tpu.core_type = #tpu.core_type<tc>, window_params = [{pipeline_mode = #tpu.pipeline_mode<synchronous>, transform_indices = @transform_0, window_bounds = array<i64: 16, 16>}, {transform_indices = @transform_1, window_bounds = array<i64: 1, 16, 8>}, {transform_indices = @transform_2, window_bounds = array<i64: 1, 16, 8>}, {transform_indices = @transform_3, window_bounds = array<i64: 1, 16, 8>}]} {
    %c0 = arith.constant 0 : index
    %c0_0 = arith.constant 0 : index
    %0 = vector.load %arg2[%c0, %c0_0] : memref<16x16xf32, #tpu.memory_space<vmem>>, vector<16x16xf32>
    %c0_1 = arith.constant 0 : index
    %c0_2 = arith.constant 0 : index
    %c0_3 = arith.constant 0 : index
    %1 = vector.load %arg3[%c0_1, %c0_2, %c0_3] : memref<1x16x8xf32, #tpu.memory_space<vmem>>, vector<1x16x8xf32>
    %2 = vector.shape_cast %1 : vector<1x16x8xf32> to vector<16x8xf32>
    %cst = arith.constant dense<0.000000e+00> : vector<16x8xf32>
    %3 = tpu.matmul %0, %2, %cst {dimension_numbers = #tpu.dot_dimension_numbers<[1], [0], [0], [1], [0, 0, 1, 1], [], []>} : vector<16x16xf32>, vector<16x8xf32>, vector<16x8xf32> -> vector<16x8xf32>
    %c0_4 = arith.constant 0 : index
    %c0_5 = arith.constant 0 : index
    %c0_6 = arith.constant 0 : index
    %4 = vector.load %arg5[%c0_4, %c0_5, %c0_6] : memref<1x16x8xf32, #tpu.memory_space<vmem>>, vector<1x16x8xf32>
    %5 = vector.shape_cast %4 : vector<1x16x8xf32> to vector<16x8xf32>
    %6 = vector.shape_cast %3 : vector<16x8xf32> to vector<1x16x8xf32>
    tpu.vector_store %arg5[%c0_4, %c0_5, %c0_6], %6 {strides = array<i32>} : memref<1x16x8xf32, #tpu.memory_space<vmem>>, vector<1x16x8xf32>,
    %7 = arith.subf %2, %3 : vector<16x8xf32>
    %c0_7 = arith.constant 0 : index
    %c0_8 = arith.constant 0 : index
    %c0_9 = arith.constant 0 : index
    %8 = vector.load %arg4[%c0_7, %c0_8, %c0_9] : memref<1x16x8xf32, #tpu.memory_space<vmem>>, vector<1x16x8xf32>
    %9 = vector.shape_cast %8 : vector<1x16x8xf32> to vector<16x8xf32>
    %10 = vector.shape_cast %7 : vector<16x8xf32> to vector<1x16x8xf32>
    tpu.vector_store %arg4[%c0_7, %c0_8, %c0_9], %10 {strides = array<i32>} : memref<1x16x8xf32, #tpu.memory_space<vmem>>, vector<1x16x8xf32>,
    return
  }
  func.func @transform_0(%arg0: i32, %arg1: i32) -> (i32, i32) {
    %c0_i32 = arith.constant 0 : i32
    %c0_i32_0 = arith.constant 0 : i32
    %c0_i32_1 = arith.constant 0 : i32
    return %c0_i32, %c0_i32_0 : i32, i32
  }
  func.func @transform_1(%arg0: i32, %arg1: i32) -> (i32, i32, i32) {
    %c0_i32 = arith.constant 0 : i32
    %c0_i32_0 = arith.constant 0 : i32
    return %arg0, %c0_i32, %arg1 : i32, i32, i32
  }
  func.func @transform_2(%arg0: i32, %arg1: i32) -> (i32, i32, i32) {
    %c0_i32 = arith.constant 0 : i32
    %c0_i32_0 = arith.constant 0 : i32
    return %arg0, %c0_i32, %arg1 : i32, i32, i32
  }
  func.func @transform_3(%arg0: i32, %arg1: i32) -> (i32, i32, i32) {
    %c0_i32 = arith.constant 0 : i32
    %c0_i32_0 = arith.constant 0 : i32
    return %arg0, %c0_i32, %arg1 : i32, i32, i32
  }
}

</mosaic_0001>

<llo_original>
// kernel: tpu_custom_call.1
$region0: #{tpu_custom_call.1}
  #allocation0 [shape = 'u32[]', space=smem, size = 0x4, offset = 0x4, fixed_abs, tag = 'smem constant byte address 0x4 - core index']
  #allocation1 [shape = 'u32[144,128]{1,0:T(1,128)}', space=vmem, size = 0x12000, scoped, tag = 'internal scratch']
  %s0 = inlined_call_operand.vmem [shape: f32[16,16], index: 0, kind: input, shape index: {}]
  %s1 = inlined_call_operand.vmem [shape: f32[2,16,8], index: 1, kind: input, shape index: {}]
  %s2 = inlined_call_operand.vmem [shape: f32[2,16,8], index: 2, kind: output, shape index: {0}]
  %s3 = inlined_call_operand.vmem [shape: f32[2,16,8], index: 3, kind: output, shape index: {1}]
  %4 = xla_tuple %s2, %s3
  %s5 = sld [smem:[#allocation0]]
  $region49: #{tpu_custom_call.1} parent=0
    _
  %s7 = ssub.s32 1, %s5
  %s8 = scalar_select 0, %s7, %s5
  loop: start=0, step=1, limit=4
  $region2: #{tpu_custom_call.1} parent=0 // loop_pre_header
    _
  $region3: #{tpu_custom_call.1} parent=0 // loop_header
    %s10 = sphi 0, %s14
    %p11 = scmp.ge.s32.totalorder %s10, 4
    %s17 = sphi 0, %s29
    %s18 = sphi 0, %s25
    %s19 = sphi 0, %s17
    %s20 = sphi 0, %s18
    %s21 = sphi 0, %s19
    %s22 = sphi 0, %s20
    %s30 = sphi 0, %s30
    %s32 = sphi 0, %s30
    %s33 = sphi 0, %s32
    %s47 = sphi 0, %s33
    %s55 = sphi 0, %s57
    %s58 = sphi 0, %s55
    %s59 = sphi 0, %s58
    %s75 = sphi 0, %s59
    %s83 = sphi 0, %s85
    %s86 = sphi 0, %s83
    %s87 = sphi 0, %s86
    %s103 = sphi 0, %s87
    %s111 = sphi 0, %s113
    %s114 = sphi 0, %s111
    %s115 = sphi 0, %s114
    %s131 = sphi 0, %s115
  $region4: #{tpu_custom_call.1} parent=0 // loop_header_branch
    %13 = sbr.rel (%p11) target = $region8
  $region5: #{tpu_custom_call.1} parent=0 // loop_body
    %s15 = ssub.s32 %s10, 1
    %s16 = ssub.s32 %s10, 2
    %s23 = sadd.s32 1, %s18
    %p24 = scmp.ge.s32.totalorder %s23, 1
    %s25 = scalar_select %p24, 0, %s23
    %s26 = sadd.s32 1, %s17
    %s27 = scalar_select %p24, %s26, %s17
    %p28 = scmp.ge.s32.totalorder %s27, 2
    %s29 = scalar_select %p28, 0, %s27
    %s31 = sadd.s32 %s30, 1
    %p34 = scmp.eq.s32.totalorder %s10, 1
    %p35 = scmp.ne.s32.totalorder %s30, %s32
    %p36 = scmp.eq.s32.totalorder %s10, 0
    %p37 = por %p35, %p36
    %p38 = scmp.ne.s32.totalorder %s30, %s32
    %p39 = scmp.eq.s32.totalorder %s15, 1
    %p40 = por %p38, %p39
    %p41 = scmp.ne.s32.totalorder %s32, %s33
    %p42 = scmp.eq.s32.totalorder %s15, 0
    %p43 = por %p41, %p42
    %p44 = scmp.ne.s32.totalorder %s32, %s33
    %p45 = scmp.eq.s32.totalorder %s16, 1
    %p46 = por %p44, %p45
    %p48 = scmp.ne.s32.totalorder %s33, %s47
    %p49 = scmp.eq.s32.totalorder %s16, 0
    %p50 = por %p48, %p49
    %s51 = ssub.s32 %s17, %s29
    %s52 = ssub.s32 %s18, %s25
    %s53 = sor.u32 %s51, %s52
    %p54 = scmp.eq.s32.totalorder %s53, 0
    %s56 = sadd.s32 %s55, 1
    %s57 = scalar_select %p54, %s55, %s56
    %p60 = pneg %p54
    %p61 = scmp.eq.s32.totalorder %s10, 1
    %p62 = por %p60, %p61
    %p63 = scmp.ne.s32.totalorder %s55, %s58
    %p64 = scmp.eq.s32.totalorder %s10, 0
    %p65 = por %p63, %p64
    %p66 = scmp.ne.s32.totalorder %s55, %s58
    %p67 = scmp.eq.s32.totalorder %s15, 1
    %p68 = por %p66, %p67
    %p69 = scmp.ne.s32.totalorder %s58, %s59
    %p70 = scmp.eq.s32.totalorder %s15, 0
    %p71 = por %p69, %p70
    %p72 = scmp.ne.s32.totalorder %s58, %s59
    %p73 = scmp.eq.s32.totalorder %s16, 1
    %p74 = por %p72, %p73
    %p76 = scmp.ne.s32.totalorder %s59, %s75
    %p77 = scmp.eq.s32.totalorder %s16, 0
    %p78 = por %p76, %p77
    %s79 = ssub.s32 %s17, %s29
    %s80 = ssub.s32 %s18, %s25
    %s81 = sor.u32 %s79, %s80
    %p82 = scmp.eq.s32.totalorder %s81, 0
    %s84 = sadd.s32 %s83, 1
    %s85 = scalar_select %p82, %s83, %s84
    %p88 = pneg %p82
    %p89 = scmp.eq.s32.totalorder %s10, 1
    %p90 = por %p88, %p89
    %p91 = scmp.ne.s32.totalorder %s83, %s86
    %p92 = scmp.eq.s32.totalorder %s10, 0
    %p93 = por %p91, %p92
    %p94 = scmp.ne.s32.totalorder %s83, %s86
    %p95 = scmp.eq.s32.totalorder %s15, 1
    %p96 = por %p94, %p95
    %p97 = scmp.ne.s32.totalorder %s86, %s87
    %p98 = scmp.eq.s32.totalorder %s15, 0
    %p99 = por %p97, %p98
    %p100 = scmp.ne.s32.totalorder %s86, %s87
    %p101 = scmp.eq.s32.totalorder %s16, 1
    %p102 = por %p100, %p101
    %p104 = scmp.ne.s32.totalorder %s87, %s103
    %p105 = scmp.eq.s32.totalorder %s16, 0
    %p106 = por %p104, %p105
    %s107 = ssub.s32 %s17, %s29
    %s108 = ssub.s32 %s18, %s25
    %s109 = sor.u32 %s107, %s108
    %p110 = scmp.eq.s32.totalorder %s109, 0
    %s112 = sadd.s32 %s111, 1
    %s113 = scalar_select %p110, %s111, %s112
    %p116 = pneg %p110
    %p117 = scmp.eq.s32.totalorder %s10, 1
    %p118 = por %p116, %p117
    %p119 = scmp.ne.s32.totalorder %s111, %s114
    %p120 = scmp.eq.s32.totalorder %s10, 0
    %p121 = por %p119, %p120
    %p122 = scmp.ne.s32.totalorder %s111, %s114
    %p123 = scmp.eq.s32.totalorder %s15, 1
    %p124 = por %p122, %p123
    %p125 = scmp.ne.s32.totalorder %s114, %s115
    %p126 = scmp.eq.s32.totalorder %s15, 0
    %p127 = por %p125, %p126
    %p128 = scmp.ne.s32.totalorder %s114, %s115
    %p129 = scmp.eq.s32.totalorder %s16, 1
    %p130 = por %p128, %p129
    %p132 = scmp.ne.s32.totalorder %s115, %s131
    %p133 = scmp.eq.s32.totalorder %s16, 0
    %p134 = por %p132, %p133
    %p135 = scmp.le.s32.totalorder 1, %s10
    %p136 = scmp.lt.s32.totalorder %s10, 3
    %p137 = pnand %p135, %p136
    %p138 = pneg %p137
    // Predicated region
    $region9: #{tpu_custom_call.1} parent=5 // pred_check
      _
    $region10: #{tpu_custom_call.1} parent=5 // pred_check_branch
      %140 = sbr.rel (%p137) target = $region12
    $region11: #{tpu_custom_call.1} parent=5 // pred_region
      %s141 = ssub.s32 %s10, 1
      // Predicated region
      $region13: #{tpu_custom_call.1} parent=11 // pred_check
        %p142 = pneg %p43
      $region14: #{tpu_custom_call.1} parent=11 // pred_check_branch
        %144 = sbr.rel (%p142) target = $region16
      $region15: #{tpu_custom_call.1} parent=11 // pred_region
        _
      $region16: #{tpu_custom_call.1} parent=11 // pred_fallthru
        _
    $region12: #{tpu_custom_call.1} parent=5 // pred_fallthru
      _
    %p145 = scmp.lt.s32.totalorder %s10, 2
    // Predicated region
    $region17: #{tpu_custom_call.1} parent=5 // pred_check
      %p146 = pneg %p145
    $region18: #{tpu_custom_call.1} parent=5 // pred_check_branch
      %148 = sbr.rel (%p146) target = $region20
    $region19: #{tpu_custom_call.1} parent=5 // pred_region
      // Predicated region
      $region21: #{tpu_custom_call.1} parent=19 // pred_check
        %p149 = pneg %p65
      $region22: #{tpu_custom_call.1} parent=19 // pred_check_branch
        %151 = sbr.rel (%p149) target = $region24
      $region23: #{tpu_custom_call.1} parent=19 // pred_region
        %p152 = scmp.lt.s32.totalorder %s17, 1
        %s153 = scalar_select %p152, %s17, 1
        %p154 = scmp.lt.s32.totalorder %s18, 0
        %s155 = scalar_select %p154, %s18, 0
        %s156 = smul.addr %s153, 2
        %s157 = sadd.s32 %s155, %s156
        %s158 = smul.addr %s157, 8
        %s159 = scalar_lea.vmem %s1, %s158
      $region24: #{tpu_custom_call.1} parent=19 // pred_fallthru
        _
    $region20: #{tpu_custom_call.1} parent=5 // pred_fallthru
      _
    %p160 = scmp.le.s32.totalorder 1, %s10
    %p161 = scmp.lt.s32.totalorder %s10, 3
    %p162 = pnand %p160, %p161
    %p163 = pneg %p162
    // Predicated region
    $region25: #{tpu_custom_call.1} parent=5 // pred_check
      _
    $region26: #{tpu_custom_call.1} parent=5 // pred_check_branch
      %165 = sbr.rel (%p162) target = $region28
    $region27: #{tpu_custom_call.1} parent=5 // pred_region
      %s166 = ssub.s32 %s10, 1
      %p167 = pneg %p43
      %p168 = pneg %p40
      %p169 = scmp.lt.s32.totalorder %s19, 1
      %s170 = scalar_select %p169, %s19, 1
      %p171 = scmp.lt.s32.totalorder %s20, 0
      %s172 = scalar_select %p171, %s20, 0
      %s173 = smul.addr %s170, 2
      %s174 = sadd.s32 %s172, %s173
      %s175 = smul.addr %s174, 8
      %s176 = scalar_lea.vmem %s1, %s175
      %p177 = pneg %p71
      %p178 = pneg %p68
      %p179 = pneg %p99
      %p180 = pneg %p96
      %p181 = scmp.lt.s32.totalorder %s19, 1
      %s182 = scalar_select %p181, %s19, 1
      %p183 = scmp.lt.s32.totalorder %s20, 0
      %s184 = scalar_select %p183, %s20, 0
      %s185 = smul.addr %s182, 2
      %s186 = sadd.s32 %s184, %s185
      %s187 = smul.addr %s186, 8
      %s188 = scalar_lea.vmem %s2, %s187
      %p189 = pneg %p127
      %p190 = pneg %p124
      %p191 = scmp.lt.s32.totalorder %s19, 1
      %s192 = scalar_select %p191, %s19, 1
      %p193 = scmp.lt.s32.totalorder %s20, 0
      %s194 = scalar_select %p193, %s20, 0
      %s195 = smul.addr %s192, 2
      %s196 = sadd.s32 %s194, %s195
      %s197 = smul.addr %s196, 8
      %s198 = scalar_lea.vmem %s3, %s197
      %p199 = scmp.lt.s32.totalorder %s19, 1
      %s200 = scalar_select %p199, %s19, 1
      %p201 = scmp.lt.s32.totalorder %s20, 0
      %s202 = scalar_select %p201, %s20, 0
      %s203 = smul.addr %s200, 2
      %s204 = sadd.s32 %s202, %s203
      %s205 = smul.addr %s204, 8
      %s206 = scalar_lea.vmem %s1, %s205
      %p207 = scmp.lt.s32.totalorder %s19, 1
      %s208 = scalar_select %p207, %s19, 1
      %p209 = scmp.lt.s32.totalorder %s20, 0
      %s210 = scalar_select %p209, %s20, 0
      %s211 = smul.addr %s208, 2
      %s212 = sadd.s32 %s210, %s211
      %s213 = smul.addr %s212, 8
      %s214 = scalar_lea.vmem %s2, %s213
      %p215 = scmp.lt.s32.totalorder %s19, 1
      %s216 = scalar_select %p215, %s19, 1
      %p217 = scmp.lt.s32.totalorder %s20, 0
      %s218 = scalar_select %p217, %s20, 0
      %s219 = smul.addr %s216, 2
      %s220 = sadd.s32 %s218, %s219
      %s221 = smul.addr %s220, 8
      %s222 = scalar_lea.vmem %s3, %s221
      %v223 = vld [vmem:[%s0] sm:$0xff]
      %v224 = vld [vmem:[%s0 + $0x8] sm:$0xff]
      %v225 = vld [vmem:[%s206] sm:$0xff]
      %v226 = vld [vmem:[%s206 + $0x8] sm:$0xff]
      %vm227 = vcmask 130048
      %v229 = vsel %vm227, %v223, 0
      %v232 = vsel %vm227, %v224, 0
      %234 = vmatprep.subr.mxu0 0.0
      %235 = vmatpush1.msra.mxu0 %v225
      %236 = vmatprep.subr.mxu0 0.0
      %237 = vmatpush1.msra.mxu0 %v226
      %238 = vmatprep.subr.mxu0 0.0
      %239 = vmatpush1.msra.mxu0 0.0
      %240 = vmatprep.subr.mxu0 0.0
      %241 = vmatpush1.msra.mxu0 0.0
      %242 = vmatprep.subr.mxu0 0.0
      %243 = vmatpush1.msra.mxu0 0.0
      %244 = vmatprep.subr.mxu0 0.0
      %245 = vmatpush1.msra.mxu0 0.0
      %246 = vmatprep.subr.mxu0 0.0
      %247 = vmatpush1.msra.mxu0 0.0
      %248 = vmatprep.subr.mxu0 0.0
      %249 = vmatpush1.msra.mxu0 0.0
      %250 = vmatprep.subr.mxu0 0.0
      %251 = vmatpush1.msra.mxu0 0.0
      %252 = vmatprep.subr.mxu0 0.0
      %253 = vmatpush1.msra.mxu0 0.0
      %254 = vmatprep.subr.mxu0 0.0
      %255 = vmatpush1.msra.mxu0 0.0
      %256 = vmatprep.subr.mxu0 0.0
      %257 = vmatpush1.msra.mxu0 0.0
      %258 = vmatprep.subr.mxu0 0.0
      %259 = vmatpush1.msra.mxu0 0.0
      %260 = vmatprep.subr.mxu0 0.0
      %261 = vmatpush1.msra.mxu0 0.0
      %262 = vmatprep.subr.mxu0 0.0
      %263 = vmatpush1.msra.mxu0 0.0
      %264 = vmatprep.subr.mxu0 0.0
      %265 = vmatpush1.msra.mxu0 0.0
      %266 = vmatprep.subr.mxu0 0.0
      %267 = vmatpush1.msra.mxu0 0.0
      %268 = vmatprep.subr.mxu0 0.0
      %269 = vmatpush1.msra.mxu0 0.0
      %270 = vmatprep.subr.mxu0 0.0
      %271 = vmatpush1.msra.mxu0 0.0
      %272 = vmatprep.subr.mxu0 0.0
      %273 = vmatpush1.msra.mxu0 0.0
      %274 = vmatprep.subr.mxu0 0.0
      %275 = vmatpush1.msra.mxu0 0.0
      %276 = vmatprep.subr.mxu0 0.0
      %277 = vmatpush1.msra.mxu0 0.0
      %278 = vmatprep.subr.mxu0 0.0
      %279 = vmatpush1.msra.mxu0 0.0
      %280 = vmatprep.subr.mxu0 0.0
      %281 = vmatpush1.msra.mxu0 0.0
      %282 = vmatprep.subr.mxu0 0.0
      %283 = vmatpush1.msra.mxu0 0.0
      %284 = vmatprep.subr.mxu0 0.0
      %285 = vmatpush1.msra.mxu0 0.0
      %286 = vmatprep.subr.mxu0 0.0
      %287 = vmatpush1.msra.mxu0 0.0
      %288 = vmatprep.subr.mxu0 0.0
      %289 = vmatpush1.msra.mxu0 0.0
      %290 = vmatprep.subr.mxu0 0.0
      %291 = vmatpush1.msra.mxu0 0.0
      %292 = vmatprep.subr.mxu0 0.0
      %293 = vmatpush1.msra.mxu0 0.0
      %294 = vmatprep.subr.mxu0 0.0
      %295 = vmatpush1.msra.mxu0 0.0
      %296 = vmatprep.subr.mxu0 0.0
      %297 = vmatpush1.msra.mxu0 0.0
      %298 = vmatprep.mubr.f32.mxu0 0.0
      %299 = vmatmul.mubr.f32.gmra.mrb[0].mxu0 %v229
      %v300 = vpop.f32.mrb[0].mxu0
      %v301 = vadd.f32 0.0, %v300
      %v302 = vpop.f32.mrb[0].mxu0
      %303 = vmatprep.mubr.f32.mxu0 0.0
      %304 = vmatmul.mubr.f32.gmra.mrb[0].mxu0 %v232
      %v305 = vpop.f32.mrb[0].mxu0
      %v306 = vadd.f32 0.0, %v305
      %v307 = vpop.f32.mrb[0].mxu0
      %308 = vdwg.mxu0
      %vm309 = vcmask 64512
      %310 = vst.msk [vmem:[%s222] sm:$0xff] %vm309, %v301
      %311 = vst.msk [vmem:[%s222 + $0x8] sm:$0xff] %vm309, %v306
      %v312 = vsub.f32 %v225, %v301
      %v313 = vsub.f32 %v226, %v306
      %314 = vst.msk [vmem:[%s214] sm:$0xff] %vm309, %v312
      %315 = vst.msk [vmem:[%s214 + $0x8] sm:$0xff] %vm309, %v313
      %p316 = scmp.lt.s32.totalorder %s19, 1
      %s317 = scalar_select %p316, %s19, 1
      %p318 = scmp.lt.s32.totalorder %s20, 0
      %s319 = scalar_select %p318, %s20, 0
      %s320 = smul.addr %s317, 2
      %s321 = sadd.s32 %s319, %s320
      %s322 = smul.addr %s321, 8
      %s323 = scalar_lea.vmem %s2, %s322
      %p324 = scmp.lt.s32.totalorder %s19, 1
      %s325 = scalar_select %p324, %s19, 1
      %p326 = scmp.lt.s32.totalorder %s20, 0
      %s327 = scalar_select %p326, %s20, 0
      %s328 = smul.addr %s325, 2
      %s329 = sadd.s32 %s327, %s328
      %s330 = smul.addr %s329, 8
      %s331 = scalar_lea.vmem %s3, %s330
      // Predicated region
      $region29: #{tpu_custom_call.1} parent=27 // pred_check
        %p332 = pneg %p96
      $region30: #{tpu_custom_call.1} parent=27 // pred_check_branch
        %334 = sbr.rel (%p332) target = $region32
      $region31: #{tpu_custom_call.1} parent=27 // pred_region
        _
      $region32: #{tpu_custom_call.1} parent=27 // pred_fallthru
        _
      // Predicated region
      $region33: #{tpu_custom_call.1} parent=27 // pred_check
        %p335 = pneg %p124
      $region34: #{tpu_custom_call.1} parent=27 // pred_check_branch
        %337 = sbr.rel (%p335) target = $region36
      $region35: #{tpu_custom_call.1} parent=27 // pred_region
        _
      $region36: #{tpu_custom_call.1} parent=27 // pred_fallthru
        _
    $region28: #{tpu_custom_call.1} parent=5 // pred_fallthru
      _
    %p338 = scmp.le.s32.totalorder 2, %s10
    // Predicated region
    $region37: #{tpu_custom_call.1} parent=5 // pred_check
      %p339 = pneg %p338
    $region38: #{tpu_custom_call.1} parent=5 // pred_check_branch
      %341 = sbr.rel (%p339) target = $region40
    $region39: #{tpu_custom_call.1} parent=5 // pred_region
      %s342 = ssub.s32 %s10, 2
      // Predicated region
      $region41: #{tpu_custom_call.1} parent=39 // pred_check
        %p343 = pneg %p102
      $region42: #{tpu_custom_call.1} parent=39 // pred_check_branch
        %345 = sbr.rel (%p343) target = $region44
      $region43: #{tpu_custom_call.1} parent=39 // pred_region
        %p346 = scmp.lt.s32.totalorder %s21, 1
        %s347 = scalar_select %p346, %s21, 1
        %p348 = scmp.lt.s32.totalorder %s22, 0
        %s349 = scalar_select %p348, %s22, 0
        %s350 = smul.addr %s347, 2
        %s351 = sadd.s32 %s349, %s350
        %s352 = smul.addr %s351, 8
        %s353 = scalar_lea.vmem %s2, %s352
      $region44: #{tpu_custom_call.1} parent=39 // pred_fallthru
        _
      // Predicated region
      $region45: #{tpu_custom_call.1} parent=39 // pred_check
        %p354 = pneg %p130
      $region46: #{tpu_custom_call.1} parent=39 // pred_check_branch
        %356 = sbr.rel (%p354) target = $region48
      $region47: #{tpu_custom_call.1} parent=39 // pred_region
        %p357 = scmp.lt.s32.totalorder %s21, 1
        %s358 = scalar_select %p357, %s21, 1
        %p359 = scmp.lt.s32.totalorder %s22, 0
        %s360 = scalar_select %p359, %s22, 0
        %s361 = smul.addr %s358, 2
        %s362 = sadd.s32 %s360, %s361
        %s363 = smul.addr %s362, 8
        %s364 = scalar_lea.vmem %s3, %s363
      $region48: #{tpu_custom_call.1} parent=39 // pred_fallthru
        _
    $region40: #{tpu_custom_call.1} parent=5 // pred_fallthru
      _
  $region6: #{tpu_custom_call.1} parent=0 // loop_footer
    %s14 = sadd.s32 1, %s10
  $region7: #{tpu_custom_call.1} parent=0 // loop_footer_branch
    %9 = sbr.rel target = $region3
  $region8: #{tpu_custom_call.1} parent=0 // loop_exit
    _

</llo_original>
